<compile_context>
chip_gen: v7x
topology: tpu7x:2x2x1
jax: 0.10.0
libtpu: 0.0.40
codegen_flags: <defaults>
</compile_context>

<pallas_src>
import jax
import jax.numpy as jnp
from jax.experimental import pallas as pl
from jax.experimental.pallas import tpu as pltpu

MAX_ACTION = 2.0   # Pendulum-v0 action range [-2, 2]; module does tanh(.) * 2
_LANE = 128        # TPU vreg lane width


def _fc1_relu(s_ref, w1t_ref, b1t_ref):
    """relu(fc1) in batch-on-lanes layout.

    s_ref  : [S, TB]  (batch on the lane axis)
    w1t_ref: [H, S]
    b1t_ref: [H, 1]
    returns  [H, TB] float32
    """
    st = s_ref[...]
    w1t = w1t_ref[...]
    S = w1t.shape[1]
    if S <= 8:
        # Tiny K: the MXU would be almost idle and we'd still pay its
        # push/pop latency -> S VPU outer-product multiply-adds instead.
        acc = w1t[:, 0:1] * st[0:1, :]
        for k in range(1, S):
            acc = acc + w1t[:, k:k + 1] * st[k:k + 1, :]
    else:
        acc = jnp.dot(w1t, st, preferred_element_type=jnp.float32)
    return jnp.maximum(acc + b1t_ref[...], 0.0)


def _actor_kernel_vecout(s_ref, w1t_ref, b1t_ref, w2c_ref, b2t_ref, out_ref):
    # action_dim == 1: fc2 = VPU multiply + sublane (XLU) reduce over hidden.
    h = _fc1_relu(s_ref, w1t_ref, b1t_ref)                               # [H, TB]
    q = jnp.sum(h * w2c_ref[...], axis=0, keepdims=True) + b2t_ref[...]  # [1, TB]
    out_ref[...] = (MAX_ACTION * jnp.tanh(q)).astype(out_ref.dtype)


def _actor_kernel_matout(s_ref, w1t_ref, b1t_ref, w2t_ref, b2t_ref, out_ref):
    # General action_dim > 1: keep fc2 on the MXU, batch stays on the lanes.
    h = _fc1_relu(s_ref, w1t_ref, b1t_ref)                               # [H, TB]
    q = (jnp.dot(w2t_ref[...], h, preferred_element_type=jnp.float32)
         + b2t_ref[...])                                                 # [A, TB]
    out_ref[...] = (MAX_ACTION * jnp.tanh(q)).astype(out_ref.dtype)


def actor_forward(s, w1, b1, w2, b2, *, tile_b=2048):
    """Actor forward: 2 * tanh( relu(s @ w1 + b1) @ w2 + b2 ).

    s : [B, state_dim]
    w1: [state_dim, hidden], b1: broadcastable to [hidden]
    w2: [hidden, action_dim], b2: broadcastable to [action_dim]
    returns [B, action_dim] float32
    """
    B, state_dim = s.shape
    hidden, action_dim = w2.shape

    # Batch-on-lanes layout plumbing (weights are <1 KB, s is [B, 3]); no
    # pad / slice passes over HBM are made.
    s_t = s.astype(jnp.float32).T                              # [S, B]
    w1_t = w1.astype(jnp.float32).T                            # [H, S]
    b1_t = jnp.reshape(b1.astype(jnp.float32), (hidden, 1))    # [H, 1]
    b2_t = jnp.reshape(b2.astype(jnp.float32), (action_dim, 1))

    if action_dim == 1:
        kernel, w2_arg = _actor_kernel_vecout, w2.astype(jnp.float32)      # [H, 1]
    else:
        kernel, w2_arg = _actor_kernel_matout, w2.astype(jnp.float32).T    # [A, H]

    # Lane tile over batch. Ragged B is handled by the cdiv grid: the tail
    # block's out-of-bounds writes are masked by Pallas.
    if B <= 2 * _LANE:
        tb = B                                    # single full-extent block
    else:
        # lane-aligned; aim for >= 2 grid steps so v7x megacore shards batch
        half = ((B + 1) // 2 + _LANE - 1) // _LANE * _LANE
        tb = max(_LANE, min(tile_b, half))
    grid = (pl.cdiv(B, tb),)

    # Weights / biases: full-shape blocks, constant index_map -> VMEM-resident.
    const = lambda a: pl.BlockSpec(a.shape, lambda i: (0,) * a.ndim)

    out_t = pl.pallas_call(
        kernel,
        out_shape=jax.ShapeDtypeStruct((action_dim, B), jnp.float32),
        grid=grid,
        in_specs=[
            pl.BlockSpec((state_dim, tb), lambda i: (0, i)),    # state tile
            const(w1_t), const(b1_t), const(w2_arg), const(b2_t),
        ],
        out_specs=pl.BlockSpec((action_dim, tb), lambda i: (0, i)),
        compiler_params=pltpu.CompilerParams(
            dimension_semantics=("parallel",)),                 # v7x: 2 TCs
    )(s_t, w1_t, b1_t, w2_arg, b2_t)

    return out_t.T                                              # [B, action_dim]


def init_params(key, state_dim, action_dim, hidden):
    """Deterministic PyTorch-style (uniform +/- 1/sqrt(fan_in)) init."""
    ks = jax.random.split(key, 4)

    def lin(kw, kb, fan_in, fan_out):
        bound = 1.0 / float(fan_in) ** 0.5
        # stored as [in, out] (transposed vs. torch's [out, in])
        w = jax.random.uniform(kw, (fan_in, fan_out), jnp.float32,
                               -bound, bound)
        b = jax.random.uniform(kb, (1, fan_out), jnp.float32, -bound, bound)
        return w, b

    w1, b1 = lin(ks[0], ks[1], state_dim, hidden)
    w2, b2 = lin(ks[2], ks[3], hidden, action_dim)
    return w1, b1, w2, b2


if __name__ == "__main__":
    # Pendulum-v0: obs dim 3, action dim 1
    STATE_DIM, ACTION_DIM, HIDDEN = 3, 1, 32

    key = jax.random.PRNGKey(0)
    k_s, k_s2, k_p = jax.random.split(key, 3)
    params = init_params(k_p, STATE_DIM, ACTION_DIM, HIDDEN)
    w1, b1, w2, b2 = params

    def ref_fn(x):
        return MAX_ACTION * jnp.tanh(jnp.maximum(x @ w1 + b1, 0.0) @ w2 + b2)

    # Small batch: single full-extent block.
    s_small = jax.random.normal(k_s, (8, STATE_DIM), jnp.float32)
    out_small = jax.block_until_ready(actor_forward(s_small, *params))
    assert out_small.shape == (8, ACTION_DIM)
    assert jnp.allclose(out_small, ref_fn(s_small), atol=1e-5, rtol=1e-5)

    # Ragged batch: exercises lane tiling (TB=256), 2 grid steps and the
    # masked tail block (no host-side pad / slice passes).
    s_big = jax.random.normal(k_s2, (300, STATE_DIM), jnp.float32)
    out_big = jax.block_until_ready(actor_forward(s_big, *params))
    assert out_big.shape == (300, ACTION_DIM)
    assert jnp.allclose(out_big, ref_fn(s_big), atol=1e-5, rtol=1e-5)

    print("KERNEL_OK")
</pallas_src>

<mosaic_0001>
module attributes {stable_mosaic.version = 11 : i64} {
  func.func @_actor_kernel_vecout(%arg0: i32, %arg1: memref<3x8xf32, #tpu.memory_space<vmem>>, %arg2: memref<32x3xf32, #tpu.memory_space<vmem>>, %arg3: memref<32x1xf32, #tpu.memory_space<vmem>>, %arg4: memref<32x1xf32, #tpu.memory_space<vmem>>, %arg5: memref<1x1xf32, #tpu.memory_space<vmem>>, %arg6: memref<1x8xf32, #tpu.memory_space<vmem>>) attributes {dimension_semantics = [#tpu.dimension_semantics<parallel>], iteration_bounds = array<i64: 1>, scalar_prefetch = 0 : i64, scratch_operands = 0 : i64, tpu.core_type = #tpu.core_type<tc>, window_params = [{transform_indices = @transform_0, window_bounds = array<i64: 3, 8>}, {pipeline_mode = #tpu.pipeline_mode<synchronous>, transform_indices = @transform_1, window_bounds = array<i64: 32, 3>}, {pipeline_mode = #tpu.pipeline_mode<synchronous>, transform_indices = @transform_2, window_bounds = array<i64: 32, 1>}, {pipeline_mode = #tpu.pipeline_mode<synchronous>, transform_indices = @transform_3, window_bounds = array<i64: 32, 1>}, {pipeline_mode = #tpu.pipeline_mode<synchronous>, transform_indices = @transform_4, window_bounds = array<i64: 1, 1>}, {transform_indices = @transform_5, window_bounds = array<i64: 1, 8>}]} {
    %c0 = arith.constant 0 : index
    %c0_0 = arith.constant 0 : index
    %0 = vector.load %arg1[%c0, %c0_0] : memref<3x8xf32, #tpu.memory_space<vmem>>, vector<3x8xf32>
    %c0_1 = arith.constant 0 : index
    %c0_2 = arith.constant 0 : index
    %1 = vector.load %arg2[%c0_1, %c0_2] : memref<32x3xf32, #tpu.memory_space<vmem>>, vector<32x3xf32>
    %2 = vector.extract_strided_slice %1 {offsets = [0, 0], sizes = [32, 1], strides = [1, 1]} : vector<32x3xf32> to vector<32x1xf32>
    %3 = vector.extract_strided_slice %0 {offsets = [0, 0], sizes = [1, 8], strides = [1, 1]} : vector<3x8xf32> to vector<1x8xf32>
    %4 = vector.broadcast %2 : vector<32x1xf32> to vector<32x8xf32>
    %5 = vector.broadcast %3 : vector<1x8xf32> to vector<32x8xf32>
    %6 = arith.mulf %4, %5 : vector<32x8xf32>
    %7 = vector.extract_strided_slice %1 {offsets = [0, 1], sizes = [32, 1], strides = [1, 1]} : vector<32x3xf32> to vector<32x1xf32>
    %8 = vector.extract_strided_slice %0 {offsets = [1, 0], sizes = [1, 8], strides = [1, 1]} : vector<3x8xf32> to vector<1x8xf32>
    %9 = vector.broadcast %7 : vector<32x1xf32> to vector<32x8xf32>
    %10 = vector.broadcast %8 : vector<1x8xf32> to vector<32x8xf32>
    %11 = arith.mulf %9, %10 : vector<32x8xf32>
    %12 = arith.addf %6, %11 : vector<32x8xf32>
    %13 = vector.extract_strided_slice %1 {offsets = [0, 2], sizes = [32, 1], strides = [1, 1]} : vector<32x3xf32> to vector<32x1xf32>
    %14 = vector.extract_strided_slice %0 {offsets = [2, 0], sizes = [1, 8], strides = [1, 1]} : vector<3x8xf32> to vector<1x8xf32>
    %15 = vector.broadcast %13 : vector<32x1xf32> to vector<32x8xf32>
    %16 = vector.broadcast %14 : vector<1x8xf32> to vector<32x8xf32>
    %17 = arith.mulf %15, %16 : vector<32x8xf32>
    %18 = arith.addf %12, %17 : vector<32x8xf32>
    %c0_3 = arith.constant 0 : index
    %c0_4 = arith.constant 0 : index
    %19 = vector.load %arg3[%c0_3, %c0_4] : memref<32x1xf32, #tpu.memory_space<vmem>>, vector<32x1xf32>
    %20 = vector.broadcast %19 : vector<32x1xf32> to vector<32x8xf32>
    %21 = arith.addf %18, %20 : vector<32x8xf32>
    %cst = arith.constant 0.000000e+00 : f32
    %22 = vector.broadcast %cst : f32 to vector<32x8xf32>
    %23 = arith.maximumf %21, %22 : vector<32x8xf32>
    %c0_5 = arith.constant 0 : index
    %c0_6 = arith.constant 0 : index
    %24 = vector.load %arg4[%c0_5, %c0_6] : memref<32x1xf32, #tpu.memory_space<vmem>>, vector<32x1xf32>
    %25 = vector.broadcast %24 : vector<32x1xf32> to vector<32x8xf32>
    %26 = arith.mulf %23, %25 : vector<32x8xf32>
    %cst_7 = arith.constant dense<0.000000e+00> : vector<8xf32>
    %27 = vector.multi_reduction <add>, %26, %cst_7 [0] : vector<32x8xf32> to vector<8xf32>
    %28 = vector.shape_cast %27 : vector<8xf32> to vector<1x8xf32>
    %c0_8 = arith.constant 0 : index
    %c0_9 = arith.constant 0 : index
    %29 = vector.load %arg5[%c0_8, %c0_9] : memref<1x1xf32, #tpu.memory_space<vmem>>, vector<1x1xf32>
    %30 = vector.broadcast %29 : vector<1x1xf32> to vector<1x8xf32>
    %31 = arith.addf %28, %30 : vector<1x8xf32>
    %32 = math.tanh %31 : vector<1x8xf32>
    %cst_10 = arith.constant 2.000000e+00 : f32
    %33 = vector.broadcast %cst_10 : f32 to vector<1x8xf32>
    %34 = arith.mulf %33, %32 : vector<1x8xf32>
    %c0_11 = arith.constant 0 : index
    %c0_12 = arith.constant 0 : index
    %35 = vector.load %arg6[%c0_11, %c0_12] : memref<1x8xf32, #tpu.memory_space<vmem>>, vector<1x8xf32>
    tpu.vector_store %arg6[%c0_11, %c0_12], %34 {strides = array<i32>} : memref<1x8xf32, #tpu.memory_space<vmem>>, vector<1x8xf32>,
    return
  }
  func.func @transform_0(%arg0: i32) -> (i32, i32) {
    %c0_i32 = arith.constant 0 : i32
    %c0_i32_0 = arith.constant 0 : i32
    return %c0_i32, %arg0 : i32, i32
  }
  func.func @transform_1(%arg0: i32) -> (i32, i32) {
    %c0_i32 = arith.constant 0 : i32
    %c0_i32_0 = arith.constant 0 : i32
    %c0_i32_1 = arith.constant 0 : i32
    return %c0_i32, %c0_i32_0 : i32, i32
  }
  func.func @transform_2(%arg0: i32) -> (i32, i32) {
    %c0_i32 = arith.constant 0 : i32
    %c0_i32_0 = arith.constant 0 : i32
    %c0_i32_1 = arith.constant 0 : i32
    return %c0_i32, %c0_i32_0 : i32, i32
  }
  func.func @transform_3(%arg0: i32) -> (i32, i32) {
    %c0_i32 = arith.constant 0 : i32
    %c0_i32_0 = arith.constant 0 : i32
    %c0_i32_1 = arith.constant 0 : i32
    return %c0_i32, %c0_i32_0 : i32, i32
  }
  func.func @transform_4(%arg0: i32) -> (i32, i32) {
    %c0_i32 = arith.constant 0 : i32
    %c0_i32_0 = arith.constant 0 : i32
    %c0_i32_1 = arith.constant 0 : i32
    return %c0_i32, %c0_i32_0 : i32, i32
  }
  func.func @transform_5(%arg0: i32) -> (i32, i32) {
    %c0_i32 = arith.constant 0 : i32
    %c0_i32_0 = arith.constant 0 : i32
    return %c0_i32, %arg0 : i32, i32
  }
}

</mosaic_0001>

<llo_original>
// kernel: tpu_custom_call.1
$region0: #{tpu_custom_call.1}
  #allocation0 [shape = 'u32[]', space=smem, size = 0x4, offset = 0x4, fixed_abs, tag = 'smem constant byte address 0x4 - core index']
  #allocation1 [shape = 'u32[144,128]{1,0:T(1,128)}', space=vmem, size = 0x12000, scoped, tag = 'internal scratch']
  #allocation2 [shape = 'f32[1,1]{1,0:T(1,128)S(1)}', space=vmem, size = 0x200, scoped, tag = 'scoped memory for tpu_custom_call.1']
  %s0 = inlined_call_operand.vmem [shape: f32[3,8], index: 0, kind: input, shape index: {}]
  %s1 = inlined_call_operand.vmem [shape: f32[32,3], index: 1, kind: input, shape index: {}]
  %s2 = inlined_call_operand.vmem [shape: f32[32,1], index: 2, kind: input, shape index: {}]
  %s3 = inlined_call_operand.vmem [shape: f32[32,1], index: 3, kind: input, shape index: {}]
  %s4 = inlined_call_operand.<no memory space> [shape: f32[1,1], index: 4, kind: input, shape index: {}]
  %s5 = inlined_call_operand.hbm [shape: f32[1,8], index: 5, kind: output, shape index: {}]
  %s6 = sld [smem:[#allocation0]]
  $region30: #{tpu_custom_call.1} parent=0
    _
  %s8 = ssub.s32 1, %s6
  %s9 = scalar_select 0, %s8, %s6
  %v10 = vstv %s4
  %11 = vst [vmem:[#allocation2] sm:$0x1] %v10
  $region1: #{tpu_custom_call.1} parent=0
    #allocation3 [shape = 'u8[512]{0}', space=vmem, size = 0x400, scoped, tag = 'output window, operand 0, single buffered']
    #allocation4 [shape = 's32[1]{0}', space=sflag, size = 0x4, scoped, tag = 'scoped memory for tpu_custom_call.1']
    %12 = vsyncpa [#allocation4], 0
    // Predicated region
    $region2: #{tpu_custom_call.1} parent=1 // pred_check
      _
    $region3: #{tpu_custom_call.1} parent=1 // pred_check_branch
      %14 = sbr.rel (0) target = $region5
    $region4: #{tpu_custom_call.1} parent=1 // pred_region
      _
    $region5: #{tpu_custom_call.1} parent=1 // pred_fallthru
      _
    // Predicated region
    $region6: #{tpu_custom_call.1} parent=1 // pred_check
      _
    $region7: #{tpu_custom_call.1} parent=1 // pred_check_branch
      %16 = sbr.rel (0) target = $region9
    $region8: #{tpu_custom_call.1} parent=1 // pred_region
      _
    $region9: #{tpu_custom_call.1} parent=1 // pred_fallthru
      _
    // Predicated region
    $region10: #{tpu_custom_call.1} parent=1 // pred_check
      _
    $region11: #{tpu_custom_call.1} parent=1 // pred_check_branch
      %18 = sbr.rel (0) target = $region13
    $region12: #{tpu_custom_call.1} parent=1 // pred_region
      _
    $region13: #{tpu_custom_call.1} parent=1 // pred_fallthru
      _
    // Predicated region
    $region14: #{tpu_custom_call.1} parent=1 // pred_check
      _
    $region15: #{tpu_custom_call.1} parent=1 // pred_check_branch
      %20 = sbr.rel (0) target = $region17
    $region16: #{tpu_custom_call.1} parent=1 // pred_region
      _
    $region17: #{tpu_custom_call.1} parent=1 // pred_fallthru
      _
    // Predicated region
    $region18: #{tpu_custom_call.1} parent=1 // pred_check
      _
    $region19: #{tpu_custom_call.1} parent=1 // pred_check_branch
      %22 = sbr.rel (0) target = $region21
    $region20: #{tpu_custom_call.1} parent=1 // pred_region
      _
    $region21: #{tpu_custom_call.1} parent=1 // pred_fallthru
      _
    %v23 = vld [vmem:[%s0] sm:$0x7]
    %v24 = vld [vmem:[%s1] sm:$0xff]
    %v25 = vld [vmem:[%s1 + $0x8] sm:$0xff]
    %v26 = vld [vmem:[%s1 + $0x10] sm:$0xff]
    %v27 = vld [vmem:[%s1 + $0x18] sm:$0xff]
    %29 = vset.pattern.permute.xlu0 0
    %30 = vperm.xlu0 %29, %v24
    %v31 = vpop.permute.xlu0 %30
    %34 = vset.pattern.permute.xlu0 0
    %35 = vperm.xlu0 %34, %v25
    %v36 = vpop.permute.xlu0 %35
    %39 = vset.pattern.permute.xlu0 0
    %40 = vperm.xlu0 %39, %v26
    %v41 = vpop.permute.xlu0 %40
    %44 = vset.pattern.permute.xlu0 0
    %45 = vperm.xlu0 %44, %v27
    %v46 = vpop.permute.xlu0 %45
    %v48 = vlaneseq
    %v49 = vshrl.u32 %v48, 7
    %v50 = vsub.s32 0, %v49
    %v51 = vrot.slane %v23, %v50
    %v52 = vmul.f32 %v31, %v51
    %v53 = vmul.f32 %v36, %v51
    %v54 = vmul.f32 %v41, %v51
    %v55 = vmul.f32 %v46, %v51
    %56 = vset.pattern.permute.xlu0 1
    %57 = vperm.xlu0 %56, %v24
    %v58 = vpop.permute.xlu0 %57
    %60 = vset.pattern.permute.xlu0 1
    %61 = vperm.xlu0 %60, %v25
    %v62 = vpop.permute.xlu0 %61
    %64 = vset.pattern.permute.xlu0 1
    %65 = vperm.xlu0 %64, %v26
    %v66 = vpop.permute.xlu0 %65
    %68 = vset.pattern.permute.xlu0 1
    %69 = vperm.xlu0 %68, %v27
    %v70 = vpop.permute.xlu0 %69
    %v72 = vlaneseq
    %v73 = vshrl.u32 %v72, 7
    %v74 = vsub.s32 1, %v73
    %v75 = vrot.slane %v23, %v74
    %v76 = vmul.f32 %v58, %v75
    %v77 = vmul.f32 %v62, %v75
    %v78 = vmul.f32 %v66, %v75
    %v79 = vmul.f32 %v70, %v75
    %v80 = vadd.f32 %v52, %v76
    %v81 = vadd.f32 %v53, %v77
    %v82 = vadd.f32 %v54, %v78
    %v83 = vadd.f32 %v55, %v79
    %84 = vset.pattern.permute.xlu0 2
    %85 = vperm.xlu0 %84, %v24
    %v86 = vpop.permute.xlu0 %85
    %88 = vset.pattern.permute.xlu0 2
    %89 = vperm.xlu0 %88, %v25
    %v90 = vpop.permute.xlu0 %89
    %92 = vset.pattern.permute.xlu0 2
    %93 = vperm.xlu0 %92, %v26
    %v94 = vpop.permute.xlu0 %93
    %96 = vset.pattern.permute.xlu0 2
    %97 = vperm.xlu0 %96, %v27
    %v98 = vpop.permute.xlu0 %97
    %v100 = vlaneseq
    %v101 = vshrl.u32 %v100, 7
    %v102 = vsub.s32 2, %v101
    %v103 = vrot.slane %v23, %v102
    %v104 = vmul.f32 %v86, %v103
    %v105 = vmul.f32 %v90, %v103
    %v106 = vmul.f32 %v94, %v103
    %v107 = vmul.f32 %v98, %v103
    %v108 = vadd.f32 %v80, %v104
    %v109 = vadd.f32 %v81, %v105
    %v110 = vadd.f32 %v82, %v106
    %v111 = vadd.f32 %v83, %v107
    %v112 = vld [vmem:[%s2] sm:$0xff]
    %v113 = vld [vmem:[%s2 + $0x8] sm:$0xff]
    %v114 = vld [vmem:[%s2 + $0x10] sm:$0xff]
    %v115 = vld [vmem:[%s2 + $0x18] sm:$0xff]
    %117 = vset.pattern.permute.xlu0 0
    %118 = vperm.xlu0 %117, %v112
    %v119 = vpop.permute.xlu0 %118
    %122 = vset.pattern.permute.xlu0 0
    %123 = vperm.xlu0 %122, %v113
    %v124 = vpop.permute.xlu0 %123
    %127 = vset.pattern.permute.xlu0 0
    %128 = vperm.xlu0 %127, %v114
    %v129 = vpop.permute.xlu0 %128
    %132 = vset.pattern.permute.xlu0 0
    %133 = vperm.xlu0 %132, %v115
    %v134 = vpop.permute.xlu0 %133
    %v136 = vadd.f32 %v108, %v119
    %v137 = vadd.f32 %v109, %v124
    %v138 = vadd.f32 %v110, %v129
    %v139 = vadd.f32 %v111, %v134
    %v140 = vmax.f32 %v136, 0.0
    %v141 = vmax.f32 %v137, 0.0
    %v142 = vmax.f32 %v138, 0.0
    %v143 = vmax.f32 %v139, 0.0
    %v144 = vld [vmem:[%s3] sm:$0xff]
    %v145 = vld [vmem:[%s3 + $0x8] sm:$0xff]
    %v146 = vld [vmem:[%s3 + $0x10] sm:$0xff]
    %v147 = vld [vmem:[%s3 + $0x18] sm:$0xff]
    %149 = vset.pattern.permute.xlu0 0
    %150 = vperm.xlu0 %149, %v144
    %v151 = vpop.permute.xlu0 %150
    %154 = vset.pattern.permute.xlu0 0
    %155 = vperm.xlu0 %154, %v145
    %v156 = vpop.permute.xlu0 %155
    %159 = vset.pattern.permute.xlu0 0
    %160 = vperm.xlu0 %159, %v146
    %v161 = vpop.permute.xlu0 %160
    %164 = vset.pattern.permute.xlu0 0
    %165 = vperm.xlu0 %164, %v147
    %v166 = vpop.permute.xlu0 %165
    %v168 = vmul.f32 %v140, %v151
    %v169 = vmul.f32 %v141, %v156
    %v170 = vmul.f32 %v142, %v161
    %v171 = vmul.f32 %v143, %v166
    %vm172 = vcmask 64512
    %v173 = vsel %vm172, %v168, 0.0
    %v174 = vsel %vm172, %v169, 0.0
    %v175 = vadd.f32 %v173, %v174
    %v176 = vsel %vm172, %v170, 0.0
    %v177 = vadd.f32 %v175, %v176
    %v178 = vsel %vm172, %v171, 0.0
    %v179 = vadd.f32 %v177, %v178
    %v180 = vrot.slane %v179, 4
    %v181 = vadd.f32 %v179, %v180
    %v182 = vrot.slane %v181, 2
    %v183 = vadd.f32 %v181, %v182
    %v184 = vrot.slane %v183, 1
    %v185 = vadd.f32 %v183, %v184
    %v186 = vld [vmem:[#allocation2] sm:$0x1]
    %188 = vset.pattern.permute.xlu0 0
    %189 = vperm.xlu0 %188, %v186
    %v190 = vpop.permute.xlu0 %189
    %v192 = vlaneseq
    %v193 = vshrl.u32 %v192, 7
    %v194 = vsub.s32 0, %v193
    %v195 = vrot.slane %v190, %v194
    %v196 = vadd.f32 %v185, %v195
    %v197 = vtanh.pop %v196
    %v198 = vmul.f32 %v197, 2.0
    %vm199 = vcmask 57344
    %200 = vst.msk [vmem:[#allocation3] sm:$0x1] %vm199, %v198
    // Predicated region
    $region22: #{tpu_custom_call.1} parent=1 // pred_check
      _
    $region23: #{tpu_custom_call.1} parent=1 // pred_check_branch
      %202 = sbr.rel (0) target = $region25
    $region24: #{tpu_custom_call.1} parent=1 // pred_region
      %s204 = ssub.s32 16, 16
      %205 = vsyncadd [#allocation4], %s204
      %s207 = sshll.u32 [#allocation3], 4
      %s208 = int_to_ptr.vmem [resolvable:$true] %s207
      %210 = dma.vmem_to_hbm [thread:$0]  %s208, 16, %s5, [#allocation4]
    $region25: #{tpu_custom_call.1} parent=1 // pred_fallthru
      _
    // Predicated region
    $region26: #{tpu_custom_call.1} parent=1 // pred_check
      _
    $region27: #{tpu_custom_call.1} parent=1 // pred_check_branch
      %212 = sbr.rel (0) target = $region29
    $region28: #{tpu_custom_call.1} parent=1 // pred_region
      %213 = dma.done [#allocation4], 16
    $region29: #{tpu_custom_call.1} parent=1 // pred_fallthru
      _
    %214 = vsyncpa [#allocation4], 1

</llo_original>
